<compile_context>
chip_gen: v6e
topology: v6e:2x2x1
jax: 0.10.0
libtpu: 0.0.40
codegen_flags: <defaults>
</compile_context>

<pallas_src>
import jax
import jax.numpy as jnp
from jax import lax
from jax.experimental import pallas as pl
from jax.experimental.pallas import tpu as pltpu


def _attention_kernel(seq_ref,   # (TB, L, D_in)  seq dtype (f32 or bf16)
                      q_ref,     # (TB, D_ctx)    f32
                      len_ref,   # (TB, 1)        int32
                      w_ref,     # (D_ctx, D_in)  f32  (PyTorch nn.Linear layout, resident)
                      ctx_ref,   # out: (TB, D_in) f32
                      sc_ref):   # out: (TB, L)    f32
    TB, L, D_in = seq_ref.shape

    seq = seq_ref[...].astype(jnp.float32)                 # upcast once (bf16 path)
    q = q_ref[...]                                         # (TB, D_ctx)
    w = w_ref[...]                                         # (D_ctx, D_in)

    # ---- query pulled through W_h: u[b,d] = sum_c q[b,c] * W[c,d] (tiny MXU op) ----
    u = jnp.dot(q, w, preferred_element_type=jnp.float32)  # (TB, D_in)

    # ---- energies (up to the per-row constant b_h·q, which softmax ignores) ----
    energies = jnp.sum(seq * u[:, None, :], axis=-1)       # (TB, L)

    # ---- masked softmax (-inf fill), vectorized over the batch tile ----
    lengths = len_ref[...]                                  # (TB, 1) int32
    pos = lax.broadcasted_iota(jnp.int32, (TB, L), 1)
    mask = pos < lengths                                    # (TB, L)

    e_masked = jnp.where(mask, energies, -jnp.inf)
    m = jnp.max(e_masked, axis=-1, keepdims=True)           # (TB, 1)
    m_safe = jnp.maximum(m, jnp.float32(-1e30))             # guard all-masked rows
    p = jnp.exp(e_masked - m_safe)                          # masked lanes -> 0
    denom = jnp.sum(p, axis=-1, keepdims=True)              # (TB, 1)
    denom_safe = jnp.where(denom > 0, denom, jnp.float32(1.0))
    inv = 1.0 / denom_safe                                   # exact divide: tiny op, kernel is HBM-bound

    sc_ref[...] = (p * inv).astype(sc_ref.dtype)

    # ---- contexts: weighted sum over L with un-normalized weights, scale once ----
    ctx_unnorm = jnp.sum(seq * p[:, :, None], axis=1)       # (TB, D_in)
    ctx_ref[...] = (ctx_unnorm * inv).astype(ctx_ref.dtype)


def _round_up(x, m):
    return ((x + m - 1) // m) * m


def _vmem_limit_bytes():
    """Per-generation scoped VMEM limit: ~96 MiB on 128-MiB parts (v5e/v6e),
    ~48 MiB on v7x (64 MiB physical)."""
    try:
        cap = pltpu.get_tpu_info().vmem_capacity_bytes
    except Exception:
        cap = 64 * 1024 * 1024                   # conservative fallback (v7x-sized)
    return int(min(cap * 3 // 4, 96 * 1024 * 1024))


def _pick_batch_tile(B, L, D_in, D_ctx, seq_itemsize, vmem_limit):
    """Batch tile tb (multiple of 8): large enough for a multi-MiB seq block per
    grid step, small enough that the full double-buffered working set (with lane/
    sublane padding) fits the per-chip VMEM budget, and capped so the grid keeps
    several steps when B allows (v7x dual-TC sharding)."""
    LANE, SUB = 128, 8
    Lp = _round_up(L, SUB)                       # seq sublane dim
    Dp = _round_up(D_in, LANE)                   # seq/contexts lane dim
    Cp = _round_up(D_ctx, LANE)                  # query lane dim
    Lp_lane = _round_up(L, LANE)                 # scores lane dim

    # Per-batch-row VMEM bytes; ×2 for double buffering of every pipelined block.
    per_row = 2 * (Lp * Dp * seq_itemsize        # sequence in
                   + Dp * 4                      # contexts out
                   + Lp_lane * 4                 # scores out
                   + Cp * 4                      # query in
                   + LANE * 4)                   # lengths in
    fixed = 2 * _round_up(D_ctx, SUB) * Dp * 4   # resident W_h (buffered)

    budget = int(vmem_limit * 0.85)
    max_tb = max(8, ((max(budget - fixed, 0) // per_row) // 8) * 8)

    # Target ~4 MiB of seq per step (amortize ~0.35 us/step pipeline overhead).
    target_seq_bytes = 4 * 1024 * 1024
    tb = max(8, _round_up(-(-target_seq_bytes // (Lp * Dp * seq_itemsize)), 8))
    tb = min(tb, max_tb)

    # Keep >= a few grid steps when the batch allows (megacore sharding on v7x).
    steps_possible = B // 8
    desired_steps = min(4, max(1, steps_possible))
    if desired_steps > 1:
        tb = min(tb, max(8, _round_up(-(-B // desired_steps), 8)))

    # Never tile past the (sublane-padded) batch itself.
    return min(tb, _round_up(B, 8))


def attention_general(sequence, query, lengths, w_h, b_h=None):
    """sequence: (B, L, D_in) f32/bf16, query: (B, D_ctx), lengths: (B,) int,
    w_h: (D_ctx, D_in) (PyTorch nn.Linear weight layout), b_h: (D_ctx,) — accepted
    for API parity but mathematically irrelevant to the outputs (softmax is
    invariant to the per-row shift b_h·q, and contexts depend only on scores).
    Returns (contexts (B, D_in) f32, scores (B, L) f32)."""
    B, L, D_in = sequence.shape
    D_ctx = query.shape[1]

    seq = jnp.asarray(sequence)
    if seq.dtype not in (jnp.float32, jnp.bfloat16):
        seq = seq.astype(jnp.float32)            # stream native f32/bf16, upcast in-kernel
    q = jnp.asarray(query, jnp.float32)
    lens = jnp.asarray(lengths, jnp.int32).reshape(B, 1)
    w = jnp.asarray(w_h, jnp.float32)            # (D_ctx, D_in): used directly as u = q @ W

    vmem_limit = _vmem_limit_bytes()
    tb = _pick_batch_tile(B, L, D_in, D_ctx, seq.dtype.itemsize, vmem_limit)
    B_pad = ((B + tb - 1) // tb) * tb
    if B_pad != B:
        pad = B_pad - B
        seq = jnp.pad(seq, ((0, pad), (0, 0), (0, 0)))
        q = jnp.pad(q, ((0, pad), (0, 0)))
        lens = jnp.pad(lens, ((0, pad), (0, 0)))  # padded rows: length 0 -> zero scores

    grid_spec = pltpu.PrefetchScalarGridSpec(
        num_scalar_prefetch=0,
        grid=(B_pad // tb,),
        in_specs=[
            pl.BlockSpec((tb, L, D_in), lambda i: (i, 0, 0)),   # sequence tile (streamed)
            pl.BlockSpec((tb, D_ctx), lambda i: (i, 0)),        # query tile
            pl.BlockSpec((tb, 1), lambda i: (i, 0)),            # lengths tile
            pl.BlockSpec((D_ctx, D_in), lambda i: (0, 0)),      # W_h (resident)
        ],
        out_specs=[
            pl.BlockSpec((tb, D_in), lambda i: (i, 0)),         # contexts (dense 2-D)
            pl.BlockSpec((tb, L), lambda i: (i, 0)),            # scores   (dense 2-D)
        ],
    )

    contexts, scores = pl.pallas_call(
        _attention_kernel,
        grid_spec=grid_spec,
        out_shape=(
            jax.ShapeDtypeStruct((B_pad, D_in), jnp.float32),
            jax.ShapeDtypeStruct((B_pad, L), jnp.float32),
        ),
        compiler_params=pltpu.CompilerParams(
            dimension_semantics=("parallel",),                  # dual-TC on v7x
            vmem_limit_bytes=vmem_limit),
    )(seq, q, lens, w)

    return contexts[:B], scores[:B]


if __name__ == "__main__":
    B, L, D_in, D_ctx = 2, 8, 16, 32

    key = jax.random.PRNGKey(0)
    k_seq, k_q, k_w, k_b = jax.random.split(key, 4)

    sequence = jax.random.normal(k_seq, (B, L, D_in), dtype=jnp.float32)
    query = jax.random.normal(k_q, (B, D_ctx), dtype=jnp.float32)
    lengths = jnp.array([L, 5], dtype=jnp.int32)

    # Parameter init (shapes match nn.Linear(input_size, context_size)):
    w_h = jax.random.normal(k_w, (D_ctx, D_in), dtype=jnp.float32) * 0.1
    b_h = jax.random.normal(k_b, (D_ctx,), dtype=jnp.float32) * 0.1

    contexts, scores = attention_general(sequence, query, lengths, w_h, b_h)
    jax.block_until_ready((contexts, scores))

    # plain-JAX reference (matches the PyTorch module, bias included)
    h_ref = jnp.einsum("bld,cd->blc", sequence, w_h) + b_h
    e_ref = jnp.einsum("blc,bc->bl", h_ref, query)
    mask = jnp.arange(L)[None, :] < lengths[:, None]
    e_m = jnp.where(mask, e_ref, -jnp.inf)
    s_ref = jax.nn.softmax(e_m, axis=-1)
    c_ref = jnp.einsum("bl,bld->bd", s_ref, sequence)

    assert jnp.allclose(scores, s_ref, rtol=1e-3, atol=1e-5), "scores mismatch (f32)"
    assert jnp.allclose(contexts, c_ref, rtol=1e-3, atol=1e-4), "contexts mismatch (f32)"

    # bf16 streaming path (halves seq HBM bytes); loose-tolerance smoke check.
    ctx_bf16, sc_bf16 = attention_general(
        sequence.astype(jnp.bfloat16), query, lengths, w_h, b_h)
    jax.block_until_ready((ctx_bf16, sc_bf16))
    assert jnp.allclose(sc_bf16, s_ref, rtol=1e-1, atol=1e-1), "scores mismatch (bf16)"
    assert jnp.allclose(ctx_bf16, c_ref, rtol=1e-1, atol=1e-1), "contexts mismatch (bf16)"

    print("KERNEL_OK")
</pallas_src>

<mosaic_0001>
module attributes {stable_mosaic.version = 11 : i64} {
  func.func @_attention_kernel(%arg0: i32, %arg1: memref<8x8x16xf32, #tpu.memory_space<vmem>>, %arg2: memref<8x32xf32, #tpu.memory_space<vmem>>, %arg3: memref<8x1xi32, #tpu.memory_space<vmem>>, %arg4: memref<32x16xf32, #tpu.memory_space<vmem>>, %arg5: memref<8x16xf32, #tpu.memory_space<vmem>>, %arg6: memref<8x8xf32, #tpu.memory_space<vmem>>) attributes {dimension_semantics = [#tpu.dimension_semantics<parallel>], iteration_bounds = array<i64: 1>, scalar_prefetch = 0 : i64, scratch_operands = 0 : i64, tpu.core_type = #tpu.core_type<tc>, window_params = [{transform_indices = @transform_0, window_bounds = array<i64: 8, 8, 16>}, {transform_indices = @transform_1, window_bounds = array<i64: 8, 32>}, {transform_indices = @transform_2, window_bounds = array<i64: 8, 1>}, {pipeline_mode = #tpu.pipeline_mode<synchronous>, transform_indices = @transform_3, window_bounds = array<i64: 32, 16>}, {transform_indices = @transform_4, window_bounds = array<i64: 8, 16>}, {transform_indices = @transform_5, window_bounds = array<i64: 8, 8>}]} {
    %c0 = arith.constant 0 : index
    %c0_0 = arith.constant 0 : index
    %c0_1 = arith.constant 0 : index
    %0 = vector.load %arg1[%c0, %c0_0, %c0_1] : memref<8x8x16xf32, #tpu.memory_space<vmem>>, vector<8x8x16xf32>
    %c0_2 = arith.constant 0 : index
    %c0_3 = arith.constant 0 : index
    %1 = vector.load %arg2[%c0_2, %c0_3] : memref<8x32xf32, #tpu.memory_space<vmem>>, vector<8x32xf32>
    %c0_4 = arith.constant 0 : index
    %c0_5 = arith.constant 0 : index
    %2 = vector.load %arg4[%c0_4, %c0_5] : memref<32x16xf32, #tpu.memory_space<vmem>>, vector<32x16xf32>
    %cst = arith.constant dense<0.000000e+00> : vector<8x16xf32>
    %3 = tpu.matmul %1, %2, %cst {dimension_numbers = #tpu.dot_dimension_numbers<[1], [0], [0], [1], [0, 0, 1, 1], [], []>} : vector<8x32xf32>, vector<32x16xf32>, vector<8x16xf32> -> vector<8x16xf32>
    %4 = vector.shape_cast %3 : vector<8x16xf32> to vector<8x1x16xf32>
    %5 = vector.broadcast %4 : vector<8x1x16xf32> to vector<8x8x16xf32>
    %6 = arith.mulf %0, %5 : vector<8x8x16xf32>
    %cst_6 = arith.constant dense<0.000000e+00> : vector<8x8xf32>
    %7 = vector.multi_reduction <add>, %6, %cst_6 [2] : vector<8x8x16xf32> to vector<8x8xf32>
    %c0_7 = arith.constant 0 : index
    %c0_8 = arith.constant 0 : index
    %8 = vector.load %arg3[%c0_7, %c0_8] : memref<8x1xi32, #tpu.memory_space<vmem>>, vector<8x1xi32>
    %9 = tpu.iota {dimensions = array<i32: 1>} : vector<8x8xi32>
    %10 = vector.broadcast %8 : vector<8x1xi32> to vector<8x8xi32>
    %11 = arith.cmpi slt, %9, %10 : vector<8x8xi32>
    %cst_9 = arith.constant 0xFF800000 : f32
    %12 = vector.broadcast %cst_9 : f32 to vector<8x8xf32>
    %13 = arith.select %11, %7, %12 : vector<8x8xi1>, vector<8x8xf32>
    %cst_10 = arith.constant dense<0xFF800000> : vector<8xf32>
    %14 = vector.multi_reduction <maximumf>, %13, %cst_10 [1] : vector<8x8xf32> to vector<8xf32>
    %15 = vector.shape_cast %14 : vector<8xf32> to vector<8x1xf32>
    %cst_11 = arith.constant -1.000000e+30 : f32
    %16 = vector.broadcast %cst_11 : f32 to vector<8x1xf32>
    %17 = arith.maximumf %15, %16 : vector<8x1xf32>
    %18 = vector.broadcast %17 : vector<8x1xf32> to vector<8x8xf32>
    %19 = arith.subf %13, %18 : vector<8x8xf32>
    %20 = math.exp %19 : vector<8x8xf32>
    %cst_12 = arith.constant dense<0.000000e+00> : vector<8xf32>
    %21 = vector.multi_reduction <add>, %20, %cst_12 [1] : vector<8x8xf32> to vector<8xf32>
    %22 = vector.shape_cast %21 : vector<8xf32> to vector<8x1xf32>
    %cst_13 = arith.constant 0.000000e+00 : f32
    %23 = vector.broadcast %cst_13 : f32 to vector<8x1xf32>
    %24 = arith.cmpf ogt, %22, %23 : vector<8x1xf32>
    %cst_14 = arith.constant 1.000000e+00 : f32
    %25 = vector.broadcast %cst_14 : f32 to vector<8x1xf32>
    %26 = arith.select %24, %22, %25 : vector<8x1xi1>, vector<8x1xf32>
    %cst_15 = arith.constant 1.000000e+00 : f32
    %27 = vector.broadcast %cst_15 : f32 to vector<8x1xf32>
    %28 = arith.divf %27, %26 : vector<8x1xf32>
    %29 = vector.broadcast %28 : vector<8x1xf32> to vector<8x8xf32>
    %30 = arith.mulf %20, %29 : vector<8x8xf32>
    %c0_16 = arith.constant 0 : index
    %c0_17 = arith.constant 0 : index
    %31 = vector.load %arg6[%c0_16, %c0_17] : memref<8x8xf32, #tpu.memory_space<vmem>>, vector<8x8xf32>
    tpu.vector_store %arg6[%c0_16, %c0_17], %30 {strides = array<i32>} : memref<8x8xf32, #tpu.memory_space<vmem>>, vector<8x8xf32>,
    %32 = vector.shape_cast %20 : vector<8x8xf32> to vector<8x8x1xf32>
    %33 = vector.broadcast %32 : vector<8x8x1xf32> to vector<8x8x16xf32>
    %34 = arith.mulf %0, %33 : vector<8x8x16xf32>
    %cst_18 = arith.constant dense<0.000000e+00> : vector<8x16xf32>
    %35 = vector.multi_reduction <add>, %34, %cst_18 [1] : vector<8x8x16xf32> to vector<8x16xf32>
    %36 = vector.broadcast %28 : vector<8x1xf32> to vector<8x16xf32>
    %37 = arith.mulf %35, %36 : vector<8x16xf32>
    %c0_19 = arith.constant 0 : index
    %c0_20 = arith.constant 0 : index
    %38 = vector.load %arg5[%c0_19, %c0_20] : memref<8x16xf32, #tpu.memory_space<vmem>>, vector<8x16xf32>
    tpu.vector_store %arg5[%c0_19, %c0_20], %37 {strides = array<i32>} : memref<8x16xf32, #tpu.memory_space<vmem>>, vector<8x16xf32>,
    return
  }
  func.func @transform_0(%arg0: i32) -> (i32, i32, i32) {
    %c0_i32 = arith.constant 0 : i32
    %c0_i32_0 = arith.constant 0 : i32
    %c0_i32_1 = arith.constant 0 : i32
    return %arg0, %c0_i32, %c0_i32_0 : i32, i32, i32
  }
  func.func @transform_1(%arg0: i32) -> (i32, i32) {
    %c0_i32 = arith.constant 0 : i32
    %c0_i32_0 = arith.constant 0 : i32
    return %arg0, %c0_i32 : i32, i32
  }
  func.func @transform_2(%arg0: i32) -> (i32, i32) {
    %c0_i32 = arith.constant 0 : i32
    %c0_i32_0 = arith.constant 0 : i32
    return %arg0, %c0_i32 : i32, i32
  }
  func.func @transform_3(%arg0: i32) -> (i32, i32) {
    %c0_i32 = arith.constant 0 : i32
    %c0_i32_0 = arith.constant 0 : i32
    %c0_i32_1 = arith.constant 0 : i32
    return %c0_i32, %c0_i32_0 : i32, i32
  }
  func.func @transform_4(%arg0: i32) -> (i32, i32) {
    %c0_i32 = arith.constant 0 : i32
    %c0_i32_0 = arith.constant 0 : i32
    return %arg0, %c0_i32 : i32, i32
  }
  func.func @transform_5(%arg0: i32) -> (i32, i32) {
    %c0_i32 = arith.constant 0 : i32
    %c0_i32_0 = arith.constant 0 : i32
    return %arg0, %c0_i32 : i32, i32
  }
}

</mosaic_0001>

<llo_original>
// kernel: tpu_custom_call.1
$region0: #{tpu_custom_call.1}
  #allocation0 [shape = 'u32[]', space=smem, size = 0x4, offset = 0x4, fixed_abs, tag = 'smem constant byte address 0x4 - core index']
  #allocation1 [shape = 'u32[144,128]{1,0:T(1,128)}', space=vmem, size = 0x12000, scoped, tag = 'internal scratch']
  %s0 = inlined_call_operand.hbm [shape: f32[8,8,16], index: 0, kind: input, shape index: {}]
  %s1 = inlined_call_operand.vmem [shape: f32[8,32], index: 1, kind: input, shape index: {}]
  %s2 = inlined_call_operand.vmem [shape: s32[8,1], index: 2, kind: input, shape index: {}]
  %s3 = inlined_call_operand.vmem [shape: f32[32,16], index: 3, kind: input, shape index: {}]
  %s4 = inlined_call_operand.hbm [shape: f32[8,16], index: 4, kind: output, shape index: {0}]
  %s5 = inlined_call_operand.hbm [shape: f32[8,8], index: 5, kind: output, shape index: {1}]
  %6 = xla_tuple %s4, %s5
  %s7 = sld [smem:[#allocation0]]
  $region38: #{tpu_custom_call.1} parent=0
    _
  %s9 = ssub.s32 1, %s7
  %s10 = scalar_select 0, %s9, %s7
  $region1: #{tpu_custom_call.1} parent=0
    #allocation2 [shape = 'u8[32768]{0}', space=vmem, size = 0x8000, scoped, tag = 'input window, operand 0, single buffered']
    #allocation3 [shape = 's32[1]{0}', space=sflag, size = 0x4, scoped, tag = 'scoped memory for tpu_custom_call.1']
    #allocation4 [shape = 's32[1]{0}', space=sflag, size = 0x4, scoped, tag = 'scoped memory for tpu_custom_call.1']
    #allocation5 [shape = 'u8[4096]{0}', space=vmem, size = 0x1000, scoped, tag = 'output window, operand 0, single buffered']
    #allocation6 [shape = 'u8[4096]{0}', space=vmem, size = 0x1000, scoped, tag = 'output window, operand 1, single buffered']
    #allocation7 [shape = 's32[1]{0}', space=sflag, size = 0x4, scoped, tag = 'scoped memory for tpu_custom_call.1']
    %11 = vsyncpa [#allocation3], 0
    %12 = vsyncpa [#allocation4], 0
    %13 = vsyncpa [#allocation7], 0
    // Predicated region
    $region2: #{tpu_custom_call.1} parent=1 // pred_check
      _
    $region3: #{tpu_custom_call.1} parent=1 // pred_check_branch
      %15 = sbr.rel (0) target = $region5
    $region4: #{tpu_custom_call.1} parent=1 // pred_region
      %s17 = ssub.s32 1024, 1024
      %18 = vsyncadd [#allocation3], %s17
      %s19 = sshll.u32 [#allocation2], 4
      %s20 = int_to_ptr.vmem [resolvable:$true] %s19
      %25 = dma.hbm_to_vmem [thread:$0]  %s0, 1024, %s20, [#allocation3], 128, 128, 8
    $region5: #{tpu_custom_call.1} parent=1 // pred_fallthru
      _
    // Predicated region
    $region6: #{tpu_custom_call.1} parent=1 // pred_check
      _
    $region7: #{tpu_custom_call.1} parent=1 // pred_check_branch
      %27 = sbr.rel (0) target = $region9
    $region8: #{tpu_custom_call.1} parent=1 // pred_region
      _
    $region9: #{tpu_custom_call.1} parent=1 // pred_fallthru
      _
    // Predicated region
    $region10: #{tpu_custom_call.1} parent=1 // pred_check
      _
    $region11: #{tpu_custom_call.1} parent=1 // pred_check_branch
      %29 = sbr.rel (0) target = $region13
    $region12: #{tpu_custom_call.1} parent=1 // pred_region
      _
    $region13: #{tpu_custom_call.1} parent=1 // pred_fallthru
      _
    // Predicated region
    $region14: #{tpu_custom_call.1} parent=1 // pred_check
      _
    $region15: #{tpu_custom_call.1} parent=1 // pred_check_branch
      %31 = sbr.rel (0) target = $region17
    $region16: #{tpu_custom_call.1} parent=1 // pred_region
      _
    $region17: #{tpu_custom_call.1} parent=1 // pred_fallthru
      _
    // Predicated region
    $region18: #{tpu_custom_call.1} parent=1 // pred_check
      _
    $region19: #{tpu_custom_call.1} parent=1 // pred_check_branch
      %33 = sbr.rel (0) target = $region21
    $region20: #{tpu_custom_call.1} parent=1 // pred_region
      %34 = dma.done [#allocation3], 1024
    $region21: #{tpu_custom_call.1} parent=1 // pred_fallthru
      _
    %v35 = vld [vmem:[#allocation2] sm:$0xff]
    %v36 = vld [vmem:[#allocation2 + $0x8] sm:$0xff]
    %v37 = vld [vmem:[#allocation2 + $0x10] sm:$0xff]
    %v38 = vld [vmem:[#allocation2 + $0x18] sm:$0xff]
    %v39 = vld [vmem:[#allocation2 + $0x20] sm:$0xff]
    %v40 = vld [vmem:[#allocation2 + $0x28] sm:$0xff]
    %v41 = vld [vmem:[#allocation2 + $0x30] sm:$0xff]
    %v42 = vld [vmem:[#allocation2 + $0x38] sm:$0xff]
    %v43 = vld [vmem:[%s1] sm:$0xff]
    %v44 = vld [vmem:[%s3] sm:$0xff]
    %v45 = vld [vmem:[%s3 + $0x8] sm:$0xff]
    %v46 = vld [vmem:[%s3 + $0x10] sm:$0xff]
    %v47 = vld [vmem:[%s3 + $0x18] sm:$0xff]
    %vm48 = vcmask 261120
    %v50 = vsel %vm48, %v43, 0
    %52 = vmatprep.subr.mxu0 0.0
    %53 = vmatpush1.msra.mxu0 0.0
    %54 = vmatprep.subr.mxu0 0.0
    %55 = vmatpush1.msra.mxu0 0.0
    %56 = vmatprep.subr.mxu0 0.0
    %57 = vmatpush1.msra.mxu0 0.0
    %58 = vmatprep.subr.mxu0 0.0
    %59 = vmatpush1.msra.mxu0 0.0
    %60 = vmatprep.subr.mxu0 0.0
    %61 = vmatpush1.msra.mxu0 0.0
    %62 = vmatprep.subr.mxu0 0.0
    %63 = vmatpush1.msra.mxu0 0.0
    %64 = vmatprep.subr.mxu0 0.0
    %65 = vmatpush1.msra.mxu0 0.0
    %66 = vmatprep.subr.mxu0 0.0
    %67 = vmatpush1.msra.mxu0 0.0
    %68 = vmatprep.subr.mxu0 0.0
    %69 = vmatpush1.msra.mxu0 0.0
    %70 = vmatprep.subr.mxu0 0.0
    %71 = vmatpush1.msra.mxu0 0.0
    %72 = vmatprep.subr.mxu0 0.0
    %73 = vmatpush1.msra.mxu0 0.0
    %74 = vmatprep.subr.mxu0 0.0
    %75 = vmatpush1.msra.mxu0 0.0
    %76 = vmatprep.subr.mxu0 0.0
    %77 = vmatpush1.msra.mxu0 %v47
    %78 = vmatprep.subr.mxu0 0.0
    %79 = vmatpush1.msra.mxu0 %v46
    %80 = vmatprep.subr.mxu0 0.0
    %81 = vmatpush1.msra.mxu0 %v45
    %82 = vmatprep.subr.mxu0 0.0
    %83 = vmatpush1.msra.mxu0 %v44
    %84 = vmatprep.subr.mxu0 0.0
    %85 = vmatpush2.msra.mxu0 0.0
    %86 = vmatprep.subr.mxu0 0.0
    %87 = vmatpush2.msra.mxu0 0.0
    %88 = vmatprep.subr.mxu0 0.0
    %89 = vmatpush2.msra.mxu0 0.0
    %90 = vmatprep.subr.mxu0 0.0
    %91 = vmatpush2.msra.mxu0 0.0
    %92 = vmatprep.subr.mxu0 0.0
    %93 = vmatpush2.msra.mxu0 0.0
    %94 = vmatprep.subr.mxu0 0.0
    %95 = vmatpush2.msra.mxu0 0.0
    %96 = vmatprep.subr.mxu0 0.0
    %97 = vmatpush2.msra.mxu0 0.0
    %98 = vmatprep.subr.mxu0 0.0
    %99 = vmatpush2.msra.mxu0 0.0
    %100 = vmatprep.subr.mxu0 0.0
    %101 = vmatpush2.msra.mxu0 0.0
    %102 = vmatprep.subr.mxu0 0.0
    %103 = vmatpush2.msra.mxu0 0.0
    %104 = vmatprep.subr.mxu0 0.0
    %105 = vmatpush2.msra.mxu0 0.0
    %106 = vmatprep.subr.mxu0 0.0
    %107 = vmatpush2.msra.mxu0 0.0
    %108 = vmatprep.subr.mxu0 0.0
    %109 = vmatpush2.msra.mxu0 0.0
    %110 = vmatprep.subr.mxu0 0.0
    %111 = vmatpush2.msra.mxu0 0.0
    %112 = vmatprep.subr.mxu0 0.0
    %113 = vmatpush2.msra.mxu0 0.0
    %114 = vmatprep.subr.mxu0 0.0
    %115 = vmatpush2.msra.mxu0 0.0
    %116 = vmatprep.mubr.f32.mxu0 0.0
    %117 = vmatmul.mubr.f32.gmra.mxu0 %v50
    %v118 = vpop.f32.mrf.mxu0
    %v119 = vadd.f32 0.0, %v118
    %v120 = vpop.f32.mrf.mxu0
    %121 = vdwg.mxu0
    %v123 = vcombine.high %v119, %v119
    %v125 = vunpack.c.l.s4 1966171168
    %v126 = vunpack.c.0.s8 %v125
    %v127 = vlaneseq
    %v128 = vshrl.u32 %v127, 7
    %v129 = vsub.s32 %v126, %v128
    %v130 = vrot.slane %v119, %v129
    %v132 = vunpack.c.l.s4 1966171168
    %v133 = vunpack.c.0.s8 %v132
    %v134 = vlaneseq
    %v135 = vshrl.u32 %v134, 7
    %v136 = vsub.s32 %v133, %v135
    %v137 = vrot.slane %v123, %v136
    %v138 = vcombine.high %v130, %v130
    %v139 = vcombine.high %v137, %v137
    %v141 = vunpack.c.l.s4 1966171168
    %v142 = vunpack.c.0.s8 %v141
    %v143 = vlaneseq
    %v144 = vshrl.u32 %v143, 7
    %v145 = vsub.s32 %v142, %v144
    %v146 = vrot.slane %v130, %v145
    %v148 = vunpack.c.l.s4 1966171168
    %v149 = vunpack.c.0.s8 %v148
    %v150 = vlaneseq
    %v151 = vshrl.u32 %v150, 7
    %v152 = vsub.s32 %v149, %v151
    %v153 = vrot.slane %v137, %v152
    %v155 = vunpack.c.l.s4 1966171168
    %v156 = vunpack.c.0.s8 %v155
    %v157 = vlaneseq
    %v158 = vshrl.u32 %v157, 7
    %v159 = vsub.s32 %v156, %v158
    %v160 = vrot.slane %v138, %v159
    %v162 = vunpack.c.l.s4 1966171168
    %v163 = vunpack.c.0.s8 %v162
    %v164 = vlaneseq
    %v165 = vshrl.u32 %v164, 7
    %v166 = vsub.s32 %v163, %v165
    %v167 = vrot.slane %v139, %v166
    %v168 = vcombine.high %v146, %v146
    %v169 = vcombine.high %v153, %v153
    %v170 = vcombine.high %v160, %v160
    %v171 = vcombine.high %v167, %v167
    %v172 = vlaneseq
    %v173 = vshrl.u32 %v172, 7
    %v174 = vsub.s32 0, %v173
    %v175 = vrot.slane %v146, %v174
    %v176 = vlaneseq
    %v177 = vshrl.u32 %v176, 7
    %v178 = vsub.s32 0, %v177
    %v179 = vrot.slane %v160, %v178
    %v180 = vlaneseq
    %v181 = vshrl.u32 %v180, 7
    %v182 = vsub.s32 0, %v181
    %v183 = vrot.slane %v168, %v182
    %v184 = vlaneseq
    %v185 = vshrl.u32 %v184, 7
    %v186 = vsub.s32 0, %v185
    %v187 = vrot.slane %v170, %v186
    %v188 = vlaneseq
    %v189 = vshrl.u32 %v188, 7
    %v190 = vsub.s32 0, %v189
    %v191 = vrot.slane %v153, %v190
    %v192 = vlaneseq
    %v193 = vshrl.u32 %v192, 7
    %v194 = vsub.s32 0, %v193
    %v195 = vrot.slane %v167, %v194
    %v196 = vlaneseq
    %v197 = vshrl.u32 %v196, 7
    %v198 = vsub.s32 0, %v197
    %v199 = vrot.slane %v169, %v198
    %v200 = vlaneseq
    %v201 = vshrl.u32 %v200, 7
    %v202 = vsub.s32 0, %v201
    %v203 = vrot.slane %v171, %v202
    %v212 = vmul.f32 %v35, %v175
    %v213 = vmul.f32 %v36, %v179
    %v214 = vmul.f32 %v37, %v183
    %v215 = vmul.f32 %v38, %v187
    %v216 = vmul.f32 %v39, %v191
    %v217 = vmul.f32 %v40, %v195
    %v218 = vmul.f32 %v41, %v199
    %v219 = vmul.f32 %v42, %v203
    %vm220 = vcmask 130048
    %v221 = vsel %vm220, %v212, 0.0
    %222 = vadd.xlane.f32.xlu0 %v221
    %v223 = vpop.xlane.xlu0 %222
    %v224 = vsel %vm220, %v213, 0.0
    %225 = vadd.xlane.f32.xlu0 %v224
    %v226 = vpop.xlane.xlu0 %225
    %v227 = vsel %vm220, %v214, 0.0
    %228 = vadd.xlane.f32.xlu0 %v227
    %v229 = vpop.xlane.xlu0 %228
    %v230 = vsel %vm220, %v215, 0.0
    %231 = vadd.xlane.f32.xlu0 %v230
    %v232 = vpop.xlane.xlu0 %231
    %v233 = vsel %vm220, %v216, 0.0
    %234 = vadd.xlane.f32.xlu0 %v233
    %v235 = vpop.xlane.xlu0 %234
    %v236 = vsel %vm220, %v217, 0.0
    %237 = vadd.xlane.f32.xlu0 %v236
    %v238 = vpop.xlane.xlu0 %237
    %v239 = vsel %vm220, %v218, 0.0
    %240 = vadd.xlane.f32.xlu0 %v239
    %v241 = vpop.xlane.xlu0 %240
    %v242 = vsel %vm220, %v219, 0.0
    %243 = vadd.xlane.f32.xlu0 %v242
    %v244 = vpop.xlane.xlu0 %243
    %v245 = vld [vmem:[%s2] sm:$0xff]
    %v246 = vlaneseq
    %v247 = vand.u32 %v246, 127
    %248 = vset.pattern.permute.xlu0 0
    %249 = vperm.xlu0 %248, %v245
    %v250 = vpop.permute.xlu0 %249
    %vm251 = vcmp.lt.s32.totalorder %v247, %v250
    %v260 = vlaneseq
    %v261 = vshrl.u32 %v260, 7
    %v262 = vsub.s32 %v247, %v261
    %v263 = vrot.slane %v223, %v262
    %v264 = vlaneseq
    %v265 = vshrl.u32 %v264, 7
    %v266 = vsub.s32 %v247, %v265
    %v267 = vrot.slane %v226, %v266
    %v268 = vlaneseq
    %v269 = vshrl.u32 %v268, 7
    %v270 = vsub.s32 %v247, %v269
    %v271 = vrot.slane %v229, %v270
    %v272 = vlaneseq
    %v273 = vshrl.u32 %v272, 7
    %v274 = vsub.s32 %v247, %v273
    %v275 = vrot.slane %v232, %v274
    %v276 = vlaneseq
    %v277 = vshrl.u32 %v276, 7
    %v278 = vsub.s32 %v247, %v277
    %v279 = vrot.slane %v235, %v278
    %v280 = vlaneseq
    %v281 = vshrl.u32 %v280, 7
    %v282 = vsub.s32 %v247, %v281
    %v283 = vrot.slane %v238, %v282
    %v284 = vlaneseq
    %v285 = vshrl.u32 %v284, 7
    %v286 = vsub.s32 %v247, %v285
    %v287 = vrot.slane %v241, %v286
    %v288 = vlaneseq
    %v289 = vshrl.u32 %v288, 7
    %v290 = vsub.s32 %v247, %v289
    %v291 = vrot.slane %v244, %v290
    %vm292 = vcmask 1041409
    %v293 = vsel %vm292, %v267, %v263
    %vm294 = vcmask 1042434
    %v295 = vsel %vm294, %v271, %v293
    %vm296 = vcmask 1043459
    %v297 = vsel %vm296, %v275, %v295
    %vm298 = vcmask 1044484
    %v299 = vsel %vm298, %v279, %v297
    %vm300 = vcmask 1045509
    %v301 = vsel %vm300, %v283, %v299
    %vm302 = vcmask 1046534
    %v303 = vsel %vm302, %v287, %v301
    %vm304 = vcmask 1047559
    %v305 = vsel %vm304, %v291, %v303
    %v307 = vsel %vm251, %v305, -inf
    %vm308 = vcmask 64512
    %v309 = vsel %vm308, %v307, -inf
    %310 = vmax.xlane.f32.xlu0 %v309
    %v311 = vpop.xlane.xlu0 %310
    %v312 = vmax.f32 %v311, -1e+30
    %v313 = vsub.f32 %v307, %v312
    %v314 = vmul.f32 %v313, 1.442695
    %v315 = vpow.pop %v314
    %v316 = vsel %vm308, %v315, 0.0
    %317 = vadd.xlane.f32.xlu0 %v316
    %v318 = vpop.xlane.xlu0 %317
    %vm319 = vcmp.gt.f32.partialorder %v318, 0.0
    %v320 = vsel %vm319, %v318, 1.0
    %v321 = vrcp.pop %v320
    %v322 = vmul.f32 1.0, %v321
    %v323 = vmul.f32 %v315, %v322
    %324 = vst.msk [vmem:[#allocation6] sm:$0xff] %vm308, %v323
    %v325 = vlaneseq
    %v326 = vshrl.u32 %v325, 7
    %v327 = vsub.s32 0, %v326
    %v328 = vrot.slane %v315, %v327
    %330 = vbcast.lane.b32.xlu0 %v328, 256
    %v331 = vpop.permute.xlu0 %330
    %v332 = vlaneseq
    %v333 = vshrl.u32 %v332, 7
    %v334 = vsub.s32 1, %v333
    %v335 = vrot.slane %v315, %v334
    %337 = vbcast.lane.b32.xlu0 %v335, 256
    %v338 = vpop.permute.xlu0 %337
    %v339 = vlaneseq
    %v340 = vshrl.u32 %v339, 7
    %v341 = vsub.s32 2, %v340
    %v342 = vrot.slane %v315, %v341
    %344 = vbcast.lane.b32.xlu0 %v342, 256
    %v345 = vpop.permute.xlu0 %344
    %v346 = vlaneseq
    %v347 = vshrl.u32 %v346, 7
    %v348 = vsub.s32 3, %v347
    %v349 = vrot.slane %v315, %v348
    %351 = vbcast.lane.b32.xlu0 %v349, 256
    %v352 = vpop.permute.xlu0 %351
    %v353 = vlaneseq
    %v354 = vshrl.u32 %v353, 7
    %v355 = vsub.s32 4, %v354
    %v356 = vrot.slane %v315, %v355
    %358 = vbcast.lane.b32.xlu0 %v356, 256
    %v359 = vpop.permute.xlu0 %358
    %v360 = vlaneseq
    %v361 = vshrl.u32 %v360, 7
    %v362 = vsub.s32 5, %v361
    %v363 = vrot.slane %v315, %v362
    %365 = vbcast.lane.b32.xlu0 %v363, 256
    %v366 = vpop.permute.xlu0 %365
    %v367 = vlaneseq
    %v368 = vshrl.u32 %v367, 7
    %v369 = vsub.s32 6, %v368
    %v370 = vrot.slane %v315, %v369
    %372 = vbcast.lane.b32.xlu0 %v370, 256
    %v373 = vpop.permute.xlu0 %372
    %v374 = vlaneseq
    %v375 = vshrl.u32 %v374, 7
    %v376 = vsub.s32 7, %v375
    %v377 = vrot.slane %v315, %v376
    %379 = vbcast.lane.b32.xlu0 %v377, 256
    %v380 = vpop.permute.xlu0 %379
    %v381 = vmul.f32 %v35, %v331
    %v382 = vmul.f32 %v36, %v338
    %v383 = vmul.f32 %v37, %v345
    %v384 = vmul.f32 %v38, %v352
    %v385 = vmul.f32 %v39, %v359
    %v386 = vmul.f32 %v40, %v366
    %v387 = vmul.f32 %v41, %v373
    %v388 = vmul.f32 %v42, %v380
    %v389 = vsel %vm220, %v381, 0.0
    %v390 = vrot.slane %v389, 4
    %v391 = vadd.f32 %v389, %v390
    %v392 = vrot.slane %v391, 2
    %v393 = vadd.f32 %v391, %v392
    %v394 = vrot.slane %v393, 1
    %v395 = vadd.f32 %v393, %v394
    %v396 = vsel %vm220, %v382, 0.0
    %v397 = vrot.slane %v396, 4
    %v398 = vadd.f32 %v396, %v397
    %v399 = vrot.slane %v398, 2
    %v400 = vadd.f32 %v398, %v399
    %v401 = vrot.slane %v400, 1
    %v402 = vadd.f32 %v400, %v401
    %v403 = vsel %vm220, %v383, 0.0
    %v404 = vrot.slane %v403, 4
    %v405 = vadd.f32 %v403, %v404
    %v406 = vrot.slane %v405, 2
    %v407 = vadd.f32 %v405, %v406
    %v408 = vrot.slane %v407, 1
    %v409 = vadd.f32 %v407, %v408
    %v410 = vsel %vm220, %v384, 0.0
    %v411 = vrot.slane %v410, 4
    %v412 = vadd.f32 %v410, %v411
    %v413 = vrot.slane %v412, 2
    %v414 = vadd.f32 %v412, %v413
    %v415 = vrot.slane %v414, 1
    %v416 = vadd.f32 %v414, %v415
    %v417 = vsel %vm220, %v385, 0.0
    %v418 = vrot.slane %v417, 4
    %v419 = vadd.f32 %v417, %v418
    %v420 = vrot.slane %v419, 2
    %v421 = vadd.f32 %v419, %v420
    %v422 = vrot.slane %v421, 1
    %v423 = vadd.f32 %v421, %v422
    %v424 = vsel %vm220, %v386, 0.0
    %v425 = vrot.slane %v424, 4
    %v426 = vadd.f32 %v424, %v425
    %v427 = vrot.slane %v426, 2
    %v428 = vadd.f32 %v426, %v427
    %v429 = vrot.slane %v428, 1
    %v430 = vadd.f32 %v428, %v429
    %v431 = vsel %vm220, %v387, 0.0
    %v432 = vrot.slane %v431, 4
    %v433 = vadd.f32 %v431, %v432
    %v434 = vrot.slane %v433, 2
    %v435 = vadd.f32 %v433, %v434
    %v436 = vrot.slane %v435, 1
    %v437 = vadd.f32 %v435, %v436
    %v438 = vsel %vm220, %v388, 0.0
    %v439 = vrot.slane %v438, 4
    %v440 = vadd.f32 %v438, %v439
    %v441 = vrot.slane %v440, 2
    %v442 = vadd.f32 %v440, %v441
    %v443 = vrot.slane %v442, 1
    %v444 = vadd.f32 %v442, %v443
    %v446 = vrot.slane %v322, 1
    %v447 = vrot.slane %v322, 2
    %v448 = vrot.slane %v322, 3
    %v449 = vrot.slane %v322, 4
    %v450 = vrot.slane %v322, 5
    %v451 = vrot.slane %v322, 6
    %v452 = vrot.slane %v322, 7
    %v461 = vmul.f32 %v395, %v322
    %v462 = vmul.f32 %v402, %v446
    %v463 = vmul.f32 %v409, %v447
    %v464 = vmul.f32 %v416, %v448
    %v465 = vmul.f32 %v423, %v449
    %v466 = vmul.f32 %v430, %v450
    %v467 = vmul.f32 %v437, %v451
    %v468 = vmul.f32 %v444, %v452
    %v477 = vrot.slane %v462, 7
    %v478 = vsel %vm292, %v477, %v461
    %v479 = vrot.slane %v463, 6
    %v480 = vsel %vm294, %v479, %v478
    %v481 = vrot.slane %v464, 5
    %v482 = vsel %vm296, %v481, %v480
    %v483 = vrot.slane %v465, 4
    %v484 = vsel %vm298, %v483, %v482
    %v485 = vrot.slane %v466, 3
    %v486 = vsel %vm300, %v485, %v484
    %v487 = vrot.slane %v467, 2
    %v488 = vsel %vm302, %v487, %v486
    %v489 = vrot.slane %v468, 1
    %v490 = vsel %vm304, %v489, %v488
    %492 = vst.msk [vmem:[#allocation5] sm:$0xff] %vm220, %v490
    // Predicated region
    $region22: #{tpu_custom_call.1} parent=1 // pred_check
      _
    $region23: #{tpu_custom_call.1} parent=1 // pred_check_branch
      %494 = sbr.rel (0) target = $region25
    $region24: #{tpu_custom_call.1} parent=1 // pred_region
      %s496 = ssub.s32 128, 128
      %497 = vsyncadd [#allocation4], %s496
      %s499 = sshll.u32 [#allocation5], 4
      %s500 = int_to_ptr.vmem [resolvable:$true] %s499
      %502 = dma.vmem_to_hbm [thread:$0]  %s500, 128, %s4, [#allocation4]
    $region25: #{tpu_custom_call.1} parent=1 // pred_fallthru
      _
    // Predicated region
    $region26: #{tpu_custom_call.1} parent=1 // pred_check
      _
    $region27: #{tpu_custom_call.1} parent=1 // pred_check_branch
      %504 = sbr.rel (0) target = $region29
    $region28: #{tpu_custom_call.1} parent=1 // pred_region
      %s506 = ssub.s32 128, 128
      %507 = vsyncadd [#allocation7], %s506
      %s509 = sshll.u32 [#allocation6], 4
      %s510 = int_to_ptr.vmem [resolvable:$true] %s509
      %512 = dma.vmem_to_hbm [thread:$0]  %s510, 128, %s5, [#allocation7]
    $region29: #{tpu_custom_call.1} parent=1 // pred_fallthru
      _
    // Predicated region
    $region30: #{tpu_custom_call.1} parent=1 // pred_check
      _
    $region31: #{tpu_custom_call.1} parent=1 // pred_check_branch
      %514 = sbr.rel (0) target = $region33
    $region32: #{tpu_custom_call.1} parent=1 // pred_region
      %515 = dma.done [#allocation4], 128
    $region33: #{tpu_custom_call.1} parent=1 // pred_fallthru
      _
    // Predicated region
    $region34: #{tpu_custom_call.1} parent=1 // pred_check
      _
    $region35: #{tpu_custom_call.1} parent=1 // pred_check_branch
      %517 = sbr.rel (0) target = $region37
    $region36: #{tpu_custom_call.1} parent=1 // pred_region
      %518 = dma.done [#allocation7], 128
    $region37: #{tpu_custom_call.1} parent=1 // pred_fallthru
      _
    %519 = vsyncpa [#allocation3], 1
    %520 = vsyncpa [#allocation4], 1
    %521 = vsyncpa [#allocation7], 1

</llo_original>
